<compile_context>
chip_gen: v5e
topology: v5e:2x2
jax: 0.10.0
libtpu: 0.0.40
codegen_flags: <defaults>
</compile_context>

<pallas_src>
import functools

import jax
import jax.numpy as jnp
import numpy as np
from jax.experimental import pallas as pl
from jax.experimental.pallas import tpu as pltpu

BN_EPS = 1e-5   # nn.BatchNorm1d default eps
LANE = 128      # TPU vreg lane width
SUBLANE = 8     # TPU vreg sublane count (f32)


def _round_up(x, m):
    return (x + m - 1) // m * m


# ----------------------------------------------------------------------------
# Fused MLP kernel.  All per-layer params live in one pre-packed VMEM slab:
#   row  0              : BatchNorm folded scale   (1, FP)
#   row  1              : BatchNorm folded shift   (1, FP)
#   rows 2 .. 2+L       : bias_i                   (1, FP) each
#   rows HDR + i*FP ..  : weight_i                 (FP, FP) each  (aligned)
# ----------------------------------------------------------------------------
def make_mlp_kernel(num_layers, relu_flags, hdr, fp):
    """relu_flags[i] == True  <=>  ReLU precedes Linear layer i (PyTorch order)."""

    def mlp_kernel(x_ref, p_ref, o_ref):
        # nn.Dropout(p=0.5): identity in eval mode.
        # nn.BatchNorm1d (eval): folded per-feature affine.
        scale = p_ref[0:1, :]                                  # (1, FP)
        shift = p_ref[1:2, :]                                  # (1, FP)
        z = x_ref[...] * scale + shift                         # (TB, FP)

        for i in range(num_layers):
            if relu_flags[i]:
                z = jnp.maximum(z, 0.0)
            w = p_ref[hdr + i * fp: hdr + (i + 1) * fp, :]     # (FP, FP)
            b = p_ref[2 + i: 3 + i, :]                         # (1, FP)
            z = jnp.dot(z, w, preferred_element_type=jnp.float32) + b

        o_ref[...] = z.astype(o_ref.dtype)

    return mlp_kernel


# ----------------------------------------------------------------------------
# Host-side packing: fold BN, pad everything to 128 lanes, build ONE slab.
# ----------------------------------------------------------------------------
def pack_params(params, layer_sizes):
    layer_sizes = tuple(int(s) for s in layer_sizes)
    num_layers = len(layer_sizes) - 1
    fp = _round_up(max(layer_sizes), LANE)
    hdr = _round_up(2 + num_layers, SUBLANE)

    def pad_row(v):
        v = jnp.asarray(v, jnp.float32).reshape(1, -1)
        return jnp.pad(v, ((0, 0), (0, fp - v.shape[1])))

    header = [pad_row(params["bn_scale"]), pad_row(params["bn_shift"])]
    header += [pad_row(b) for b in params["biases"]]
    pad_rows = hdr - (2 + num_layers)
    if pad_rows:
        header.append(jnp.zeros((pad_rows, fp), jnp.float32))
    blocks = [jnp.concatenate(header, axis=0)]

    for w in params["weights"]:
        fi, fo = w.shape
        blocks.append(jnp.pad(w.astype(jnp.float32),
                              ((0, fp - fi), (0, fp - fo))))
    return jnp.concatenate(blocks, axis=0)          # (hdr + L*fp, fp)


# ----------------------------------------------------------------------------
# Wrapper: one pallas_call; lane-dense padded I/O; 1-D batch grid with the
# param slab resident across grid steps.
# ----------------------------------------------------------------------------
def mlp_forward(x, param_slab, *, layer_sizes, final_relu=False,
                block_batch=512):
    layer_sizes = tuple(int(s) for s in layer_sizes)
    num_layers = len(layer_sizes) - 1
    fp = _round_up(max(layer_sizes), LANE)
    hdr = _round_up(2 + num_layers, SUBLANE)
    out_dim = layer_sizes[-1]

    final_relu_layer = num_layers if final_relu else num_layers - 1
    relu_flags = tuple(i < final_relu_layer for i in range(num_layers))

    batch, f_in = x.shape
    assert f_in == layer_sizes[0]

    # Batch tile: sublane-aligned; capped so double-buffered x/out tiles plus
    # the resident param slab stay well under the 16 MiB v5e scoped default.
    tb = min(_round_up(batch, SUBLANE), block_batch)
    b_pad = _round_up(batch, tb)

    xp = jnp.pad(x.astype(jnp.float32),
                 ((0, b_pad - batch), (0, fp - f_in)))        # (b_pad, fp)

    out_padded = pl.pallas_call(
        make_mlp_kernel(num_layers, relu_flags, hdr, fp),
        out_shape=jax.ShapeDtypeStruct((b_pad, fp), jnp.float32),
        grid=(b_pad // tb,),
        in_specs=[
            pl.BlockSpec((tb, fp), lambda i: (i, 0)),          # x tile
            pl.BlockSpec((hdr + num_layers * fp, fp),          # param slab,
                         lambda i: (0, 0)),                    # resident
        ],
        out_specs=pl.BlockSpec((tb, fp), lambda i: (i, 0)),
        compiler_params=pltpu.CompilerParams(
            dimension_semantics=("parallel",)),                # v7x: 2 TCs
    )(xp, param_slab)

    return out_padded[:batch, :out_dim]


# ----------------------------------------------------------------------------
# Parameter init (natural/unpadded; BN folded so the graph stays minimal).
# ----------------------------------------------------------------------------
def init_params(key, layer_sizes):
    f0 = layer_sizes[0]
    keys = jax.random.split(key, 4 + 2 * (len(layer_sizes) - 1))

    # BatchNorm1d(layer_sizes[0]) in eval mode with (random) running stats.
    gamma = 0.5 + jax.random.uniform(keys[0], (f0,), jnp.float32)        # > 0
    beta = 0.1 * jax.random.normal(keys[1], (f0,), jnp.float32)
    running_mean = 0.1 * jax.random.normal(keys[2], (f0,), jnp.float32)
    running_var = 0.5 + jax.random.uniform(keys[3], (f0,), jnp.float32)  # > 0
    scale = gamma / jnp.sqrt(running_var + BN_EPS)
    shift = beta - running_mean * scale

    weights, biases = [], []
    for i in range(len(layer_sizes) - 1):
        fi, fo = layer_sizes[i], layer_sizes[i + 1]
        kw, kb = keys[4 + 2 * i], keys[5 + 2 * i]
        bound = 1.0 / np.sqrt(fi)  # PyTorch nn.Linear default init range
        weights.append(jax.random.uniform(kw, (fi, fo), jnp.float32,
                                          minval=-bound, maxval=bound))
        biases.append(jax.random.uniform(kb, (1, fo), jnp.float32,
                                         minval=-bound, maxval=bound))

    return {
        "bn_scale": scale.reshape(1, f0),
        "bn_shift": shift.reshape(1, f0),
        "weights": weights,
        "biases": biases,
    }


# ----------------------------------------------------------------------------
# Pure-JAX reference (validation only).
# ----------------------------------------------------------------------------
def reference_forward(x, params, *, final_relu=False):
    num_layers = len(params["weights"])
    final_relu_layer = num_layers if final_relu else num_layers - 1
    z = x * params["bn_scale"] + params["bn_shift"]
    for i, (w, b) in enumerate(zip(params["weights"], params["biases"])):
        if i < final_relu_layer:
            z = jnp.maximum(z, 0.0)
        z = jnp.dot(z, w, preferred_element_type=jnp.float32) + b
    return z


if __name__ == "__main__":
    key = jax.random.PRNGKey(0)
    kx, kp = jax.random.split(key)

    # Small shapes consistent with the module: an MLP over feature vectors.
    layer_sizes = [32, 64, 64, 32]
    batch = 8
    final_relu = False

    x = jax.random.normal(kx, (batch, layer_sizes[0]), jnp.float32)
    params = init_params(kp, layer_sizes)
    param_slab = jax.block_until_ready(pack_params(params, layer_sizes))

    fwd = jax.jit(functools.partial(mlp_forward,
                                    layer_sizes=tuple(layer_sizes),
                                    final_relu=final_relu))
    out = jax.block_until_ready(fwd(x, param_slab))

    ref = jax.block_until_ready(
        reference_forward(x, params, final_relu=final_relu))
    np.testing.assert_allclose(np.asarray(out), np.asarray(ref),
                               rtol=1e-5, atol=1e-5)
    assert out.shape == (batch, layer_sizes[-1]) and out.dtype == jnp.float32

    print("KERNEL_OK")
</pallas_src>

<mosaic_0001>
module attributes {stable_mosaic.version = 11 : i64} {
  func.func @mlp_kernel(%arg0: i32, %arg1: memref<8x128xf32, #tpu.memory_space<vmem>>, %arg2: memref<392x128xf32, #tpu.memory_space<vmem>>, %arg3: memref<8x128xf32, #tpu.memory_space<vmem>>) attributes {dimension_semantics = [#tpu.dimension_semantics<parallel>], iteration_bounds = array<i64: 1>, scalar_prefetch = 0 : i64, scratch_operands = 0 : i64, tpu.core_type = #tpu.core_type<tc>, window_params = [{transform_indices = @transform_0, window_bounds = array<i64: 8, 128>}, {pipeline_mode = #tpu.pipeline_mode<synchronous>, transform_indices = @transform_1, window_bounds = array<i64: 392, 128>}, {transform_indices = @transform_2, window_bounds = array<i64: 8, 128>}]} {
    %c0 = arith.constant 0 : index
    %c0_0 = arith.constant 0 : index
    %0 = vector.load %arg2[%c0, %c0_0] : memref<392x128xf32, #tpu.memory_space<vmem>>, vector<1x128xf32>
    %c1 = arith.constant 1 : index
    %c0_1 = arith.constant 0 : index
    %1 = vector.load %arg2[%c1, %c0_1] : memref<392x128xf32, #tpu.memory_space<vmem>>, vector<1x128xf32>
    %c0_2 = arith.constant 0 : index
    %c0_3 = arith.constant 0 : index
    %2 = vector.load %arg1[%c0_2, %c0_3] : memref<8x128xf32, #tpu.memory_space<vmem>>, vector<8x128xf32>
    %3 = vector.broadcast %0 : vector<1x128xf32> to vector<8x128xf32>
    %4 = arith.mulf %2, %3 : vector<8x128xf32>
    %5 = vector.broadcast %1 : vector<1x128xf32> to vector<8x128xf32>
    %6 = arith.addf %4, %5 : vector<8x128xf32>
    %cst = arith.constant 0.000000e+00 : f32
    %7 = vector.broadcast %cst : f32 to vector<8x128xf32>
    %8 = arith.maximumf %6, %7 : vector<8x128xf32>
    %c8 = arith.constant 8 : index
    %c0_4 = arith.constant 0 : index
    %9 = vector.load %arg2[%c8, %c0_4] : memref<392x128xf32, #tpu.memory_space<vmem>>, vector<128x128xf32>
    %c2 = arith.constant 2 : index
    %c0_5 = arith.constant 0 : index
    %10 = vector.load %arg2[%c2, %c0_5] : memref<392x128xf32, #tpu.memory_space<vmem>>, vector<1x128xf32>
    %cst_6 = arith.constant dense<0.000000e+00> : vector<8x128xf32>
    %11 = tpu.matmul %8, %9, %cst_6 {dimension_numbers = #tpu.dot_dimension_numbers<[1], [0], [0], [1], [0, 0, 1, 1], [], []>} : vector<8x128xf32>, vector<128x128xf32>, vector<8x128xf32> -> vector<8x128xf32>
    %12 = vector.broadcast %10 : vector<1x128xf32> to vector<8x128xf32>
    %13 = arith.addf %11, %12 : vector<8x128xf32>
    %cst_7 = arith.constant 0.000000e+00 : f32
    %14 = vector.broadcast %cst_7 : f32 to vector<8x128xf32>
    %15 = arith.maximumf %13, %14 : vector<8x128xf32>
    %c136 = arith.constant 136 : index
    %c0_8 = arith.constant 0 : index
    %16 = vector.load %arg2[%c136, %c0_8] : memref<392x128xf32, #tpu.memory_space<vmem>>, vector<128x128xf32>
    %c3 = arith.constant 3 : index
    %c0_9 = arith.constant 0 : index
    %17 = vector.load %arg2[%c3, %c0_9] : memref<392x128xf32, #tpu.memory_space<vmem>>, vector<1x128xf32>
    %cst_10 = arith.constant dense<0.000000e+00> : vector<8x128xf32>
    %18 = tpu.matmul %15, %16, %cst_10 {dimension_numbers = #tpu.dot_dimension_numbers<[1], [0], [0], [1], [0, 0, 1, 1], [], []>} : vector<8x128xf32>, vector<128x128xf32>, vector<8x128xf32> -> vector<8x128xf32>
    %19 = vector.broadcast %17 : vector<1x128xf32> to vector<8x128xf32>
    %20 = arith.addf %18, %19 : vector<8x128xf32>
    %c264 = arith.constant 264 : index
    %c0_11 = arith.constant 0 : index
    %21 = vector.load %arg2[%c264, %c0_11] : memref<392x128xf32, #tpu.memory_space<vmem>>, vector<128x128xf32>
    %c4 = arith.constant 4 : index
    %c0_12 = arith.constant 0 : index
    %22 = vector.load %arg2[%c4, %c0_12] : memref<392x128xf32, #tpu.memory_space<vmem>>, vector<1x128xf32>
    %cst_13 = arith.constant dense<0.000000e+00> : vector<8x128xf32>
    %23 = tpu.matmul %20, %21, %cst_13 {dimension_numbers = #tpu.dot_dimension_numbers<[1], [0], [0], [1], [0, 0, 1, 1], [], []>} : vector<8x128xf32>, vector<128x128xf32>, vector<8x128xf32> -> vector<8x128xf32>
    %24 = vector.broadcast %22 : vector<1x128xf32> to vector<8x128xf32>
    %25 = arith.addf %23, %24 : vector<8x128xf32>
    %c0_14 = arith.constant 0 : index
    %c0_15 = arith.constant 0 : index
    %26 = vector.load %arg3[%c0_14, %c0_15] : memref<8x128xf32, #tpu.memory_space<vmem>>, vector<8x128xf32>
    tpu.vector_store %arg3[%c0_14, %c0_15], %25 {strides = array<i32>} : memref<8x128xf32, #tpu.memory_space<vmem>>, vector<8x128xf32>,
    return
  }
  func.func @transform_0(%arg0: i32) -> (i32, i32) {
    %c0_i32 = arith.constant 0 : i32
    %c0_i32_0 = arith.constant 0 : i32
    return %arg0, %c0_i32 : i32, i32
  }
  func.func @transform_1(%arg0: i32) -> (i32, i32) {
    %c0_i32 = arith.constant 0 : i32
    %c0_i32_0 = arith.constant 0 : i32
    %c0_i32_1 = arith.constant 0 : i32
    return %c0_i32, %c0_i32_0 : i32, i32
  }
  func.func @transform_2(%arg0: i32) -> (i32, i32) {
    %c0_i32 = arith.constant 0 : i32
    %c0_i32_0 = arith.constant 0 : i32
    return %arg0, %c0_i32 : i32, i32
  }
}

</mosaic_0001>

<llo_original>
// kernel: mlp_forward.1
$region0: #{mlp_forward.1}
  #allocation0 [shape = 'u32[]', space=smem, size = 0x4, offset = 0x4, fixed_abs, tag = 'smem constant byte address 0x4 - core index']
  #allocation1 [shape = 'u32[72,128]{1,0:T(1,128)}', space=vmem, size = 0x9000, scoped, tag = 'internal scratch']
  %s0 = inlined_call_operand.vmem [shape: f32[8,128], index: 0, kind: input, shape index: {}]
  %s1 = inlined_call_operand.hbm [shape: f32[392,128], index: 1, kind: input, shape index: {}]
  %s2 = inlined_call_operand.hbm [shape: f32[8,128], index: 2, kind: output, shape index: {}]
  %s3 = sld [smem:[#allocation0]]
  $region22: #{mlp_forward.1} parent=0
    _
  %s5 = ssub.s32 1, %s3
  %s6 = scalar_select 0, %s5, %s3
  $region1: #{mlp_forward.1} parent=0
    #allocation2 [shape = 'u8[200704]{0}', space=vmem, size = 0x31000, scoped, tag = 'input window, operand 1, single buffered']
    #allocation3 [shape = 's32[1]{0}', space=sflag, size = 0x4, scoped, tag = 'scoped memory for mlp_forward.1']
    #allocation4 [shape = 's32[1]{0}', space=sflag, size = 0x4, scoped, tag = 'scoped memory for mlp_forward.1']
    #allocation5 [shape = 'u8[4096]{0}', space=vmem, size = 0x1000, scoped, tag = 'output window, operand 0, single buffered']
    %7 = vsyncpa [#allocation3], 0
    %8 = vsyncpa [#allocation4], 0
    // Predicated region
    $region2: #{mlp_forward.1} parent=1 // pred_check
      _
    $region3: #{mlp_forward.1} parent=1 // pred_check_branch
      %10 = sbr.rel (0) target = $region5
    $region4: #{mlp_forward.1} parent=1 // pred_region
      _
    $region5: #{mlp_forward.1} parent=1 // pred_fallthru
      _
    // Predicated region
    $region6: #{mlp_forward.1} parent=1 // pred_check
      _
    $region7: #{mlp_forward.1} parent=1 // pred_check_branch
      %12 = sbr.rel (0) target = $region9
    $region8: #{mlp_forward.1} parent=1 // pred_region
      %14 = vsyncadd [#allocation3], 0
      %s15 = sshll.u32 %s1, 4
      %s16 = int_to_ptr.hbm [resolvable:$true] %s15
      %s17 = sshll.u32 [#allocation2], 4
      %s18 = int_to_ptr.vmem [resolvable:$true] %s17
      %23 = dma.hbm_to_vmem [thread:$0]  %s16, 6272, %s18, [#allocation3], 128, 128, 8
    $region9: #{mlp_forward.1} parent=1 // pred_fallthru
      _
    // Predicated region
    $region10: #{mlp_forward.1} parent=1 // pred_check
      _
    $region11: #{mlp_forward.1} parent=1 // pred_check_branch
      %25 = sbr.rel (0) target = $region13
    $region12: #{mlp_forward.1} parent=1 // pred_region
      %27 = dma.done [#allocation3], 6272
    $region13: #{mlp_forward.1} parent=1 // pred_fallthru
      _
    %v28 = vld [vmem:[#allocation2] sm:$0x1]
    %v29 = vld [vmem:[#allocation2 + $0x1] sm:$0x1]
    %v30 = vld [vmem:[%s0] sm:$0xff]
    %v31 = vperm.slane %v28, 0
    %v32 = vmul.f32 %v30, %v31
    %v33 = vperm.slane %v29, 0
    %v34 = vadd.f32 %v32, %v33
    %v35 = vmax.f32 %v34, 0.0
    %v36 = vld [vmem:[#allocation2 + $0x8] sm:$0xff]
    %v37 = vld [vmem:[#allocation2 + $0x10] sm:$0xff]
    %v38 = vld [vmem:[#allocation2 + $0x18] sm:$0xff]
    %v39 = vld [vmem:[#allocation2 + $0x20] sm:$0xff]
    %v40 = vld [vmem:[#allocation2 + $0x28] sm:$0xff]
    %v41 = vld [vmem:[#allocation2 + $0x30] sm:$0xff]
    %v42 = vld [vmem:[#allocation2 + $0x38] sm:$0xff]
    %v43 = vld [vmem:[#allocation2 + $0x40] sm:$0xff]
    %v44 = vld [vmem:[#allocation2 + $0x48] sm:$0xff]
    %v45 = vld [vmem:[#allocation2 + $0x50] sm:$0xff]
    %v46 = vld [vmem:[#allocation2 + $0x58] sm:$0xff]
    %v47 = vld [vmem:[#allocation2 + $0x60] sm:$0xff]
    %v48 = vld [vmem:[#allocation2 + $0x68] sm:$0xff]
    %v49 = vld [vmem:[#allocation2 + $0x70] sm:$0xff]
    %v50 = vld [vmem:[#allocation2 + $0x78] sm:$0xff]
    %v51 = vld [vmem:[#allocation2 + $0x80] sm:$0xff]
    %v52 = vld [vmem:[#allocation2 + $0x2] sm:$0x1]
    %v53 = vperm.slane %v52, 0
    %54 = vmatpush.msra.mxu0 %v51
    %55 = vmatpush.msra.mxu0 %v50
    %56 = vmatpush.msra.mxu0 %v49
    %57 = vmatpush.msra.mxu0 %v48
    %58 = vmatpush.msra.mxu0 %v47
    %59 = vmatpush.msra.mxu0 %v46
    %60 = vmatpush.msra.mxu0 %v45
    %61 = vmatpush.msra.mxu0 %v44
    %62 = vmatpush.msra.mxu0 %v43
    %63 = vmatpush.msra.mxu0 %v42
    %64 = vmatpush.msra.mxu0 %v41
    %65 = vmatpush.msra.mxu0 %v40
    %66 = vmatpush.msra.mxu0 %v39
    %67 = vmatpush.msra.mxu0 %v38
    %68 = vmatpush.msra.mxu0 %v37
    %69 = vmatpush.msra.mxu0 %v36
    %70 = vmatmul.f32.gmra.mxu0 %v35
    %v71 = vpop.f32.mrf.mxu0
    %v72 = vadd.f32 %v53, %v71
    %73 = vdwg.mxu0
    %v74 = vmax.f32 %v72, 0.0
    %v75 = vld [vmem:[#allocation2 + $0x88] sm:$0xff]
    %v76 = vld [vmem:[#allocation2 + $0x90] sm:$0xff]
    %v77 = vld [vmem:[#allocation2 + $0x98] sm:$0xff]
    %v78 = vld [vmem:[#allocation2 + $0xa0] sm:$0xff]
    %v79 = vld [vmem:[#allocation2 + $0xa8] sm:$0xff]
    %v80 = vld [vmem:[#allocation2 + $0xb0] sm:$0xff]
    %v81 = vld [vmem:[#allocation2 + $0xb8] sm:$0xff]
    %v82 = vld [vmem:[#allocation2 + $0xc0] sm:$0xff]
    %v83 = vld [vmem:[#allocation2 + $0xc8] sm:$0xff]
    %v84 = vld [vmem:[#allocation2 + $0xd0] sm:$0xff]
    %v85 = vld [vmem:[#allocation2 + $0xd8] sm:$0xff]
    %v86 = vld [vmem:[#allocation2 + $0xe0] sm:$0xff]
    %v87 = vld [vmem:[#allocation2 + $0xe8] sm:$0xff]
    %v88 = vld [vmem:[#allocation2 + $0xf0] sm:$0xff]
    %v89 = vld [vmem:[#allocation2 + $0xf8] sm:$0xff]
    %v90 = vld [vmem:[#allocation2 + $0x100] sm:$0xff]
    %v91 = vld [vmem:[#allocation2 + $0x3] sm:$0x1]
    %v92 = vperm.slane %v91, 0
    %93 = vmatpush.msra.mxu0 %v90
    %94 = vmatpush.msra.mxu0 %v89
    %95 = vmatpush.msra.mxu0 %v88
    %96 = vmatpush.msra.mxu0 %v87
    %97 = vmatpush.msra.mxu0 %v86
    %98 = vmatpush.msra.mxu0 %v85
    %99 = vmatpush.msra.mxu0 %v84
    %100 = vmatpush.msra.mxu0 %v83
    %101 = vmatpush.msra.mxu0 %v82
    %102 = vmatpush.msra.mxu0 %v81
    %103 = vmatpush.msra.mxu0 %v80
    %104 = vmatpush.msra.mxu0 %v79
    %105 = vmatpush.msra.mxu0 %v78
    %106 = vmatpush.msra.mxu0 %v77
    %107 = vmatpush.msra.mxu0 %v76
    %108 = vmatpush.msra.mxu0 %v75
    %109 = vmatmul.f32.gmra.mxu0 %v74
    %v110 = vpop.f32.mrf.mxu0
    %v111 = vadd.f32 %v92, %v110
    %112 = vdwg.mxu0
    %v113 = vld [vmem:[#allocation2 + $0x108] sm:$0xff]
    %v114 = vld [vmem:[#allocation2 + $0x110] sm:$0xff]
    %v115 = vld [vmem:[#allocation2 + $0x118] sm:$0xff]
    %v116 = vld [vmem:[#allocation2 + $0x120] sm:$0xff]
    %v117 = vld [vmem:[#allocation2 + $0x128] sm:$0xff]
    %v118 = vld [vmem:[#allocation2 + $0x130] sm:$0xff]
    %v119 = vld [vmem:[#allocation2 + $0x138] sm:$0xff]
    %v120 = vld [vmem:[#allocation2 + $0x140] sm:$0xff]
    %v121 = vld [vmem:[#allocation2 + $0x148] sm:$0xff]
    %v122 = vld [vmem:[#allocation2 + $0x150] sm:$0xff]
    %v123 = vld [vmem:[#allocation2 + $0x158] sm:$0xff]
    %v124 = vld [vmem:[#allocation2 + $0x160] sm:$0xff]
    %v125 = vld [vmem:[#allocation2 + $0x168] sm:$0xff]
    %v126 = vld [vmem:[#allocation2 + $0x170] sm:$0xff]
    %v127 = vld [vmem:[#allocation2 + $0x178] sm:$0xff]
    %v128 = vld [vmem:[#allocation2 + $0x180] sm:$0xff]
    %v129 = vld [vmem:[#allocation2 + $0x4] sm:$0x1]
    %v130 = vperm.slane %v129, 0
    %131 = vmatpush.msra.mxu0 %v128
    %132 = vmatpush.msra.mxu0 %v127
    %133 = vmatpush.msra.mxu0 %v126
    %134 = vmatpush.msra.mxu0 %v125
    %135 = vmatpush.msra.mxu0 %v124
    %136 = vmatpush.msra.mxu0 %v123
    %137 = vmatpush.msra.mxu0 %v122
    %138 = vmatpush.msra.mxu0 %v121
    %139 = vmatpush.msra.mxu0 %v120
    %140 = vmatpush.msra.mxu0 %v119
    %141 = vmatpush.msra.mxu0 %v118
    %142 = vmatpush.msra.mxu0 %v117
    %143 = vmatpush.msra.mxu0 %v116
    %144 = vmatpush.msra.mxu0 %v115
    %145 = vmatpush.msra.mxu0 %v114
    %146 = vmatpush.msra.mxu0 %v113
    %147 = vmatmul.f32.gmra.mxu0 %v111
    %v148 = vpop.f32.mrf.mxu0
    %v149 = vadd.f32 %v130, %v148
    %150 = vdwg.mxu0
    %151 = vst [vmem:[#allocation5] sm:$0xff] %v149
    // Predicated region
    $region14: #{mlp_forward.1} parent=1 // pred_check
      _
    $region15: #{mlp_forward.1} parent=1 // pred_check_branch
      %153 = sbr.rel (0) target = $region17
    $region16: #{mlp_forward.1} parent=1 // pred_region
      %155 = vsyncadd [#allocation4], 0
      %s157 = sshll.u32 [#allocation5], 4
      %s158 = int_to_ptr.vmem [resolvable:$true] %s157
      %s159 = sshll.u32 %s2, 4
      %s160 = int_to_ptr.hbm [resolvable:$true] %s159
      %162 = dma.vmem_to_hbm [thread:$0]  %s158, 128, %s160, [#allocation4]
    $region17: #{mlp_forward.1} parent=1 // pred_fallthru
      _
    // Predicated region
    $region18: #{mlp_forward.1} parent=1 // pred_check
      _
    $region19: #{mlp_forward.1} parent=1 // pred_check_branch
      %164 = sbr.rel (0) target = $region21
    $region20: #{mlp_forward.1} parent=1 // pred_region
      %166 = dma.done [#allocation4], 128
    $region21: #{mlp_forward.1} parent=1 // pred_fallthru
      _
    %167 = vsyncpa [#allocation3], 1
    %168 = vsyncpa [#allocation4], 1

</llo_original>
